<compile_context>
chip_gen: v6e
topology: v6e:2x2x1
jax: 0.10.0
libtpu: 0.0.40
codegen_flags: <defaults>
</compile_context>

<pallas_src>
import jax
import jax.numpy as jnp
from jax import lax
from jax.experimental import pallas as pl
from jax.experimental.pallas import tpu as pltpu

_LANES = 128        # vreg lane width
_SUBLANES = 8       # vreg sublane count (f32)
_CHUNK_ROWS = 512   # rows per inner accumulation chunk (256 KiB f32 temps/tensor)
_PRED_PAD = -1e4    # sigmoid(-1e4) == 0 exactly in f32 (tanh(-5e3) == -1)


def _cdiv(a, b):
    return -(-a // b)


def _round_up(a, b):
    return _cdiv(a, b) * b


def _device_kind():
    try:
        return (jax.devices()[0].device_kind or "").lower()
    except Exception:
        return ""


def _target_block_bytes(kind):
    # Pure HBM-streaming kernel: block size trades per-step pipeline overhead
    # (~0.35 us) against DMA time, which is generation dependent.
    if "v5e" in kind or "v5 lite" in kind or "v5lite" in kind:
        return 1 << 20   # v5e: ~88% of roofline already at 1 MiB; stay under 16 MiB scoped VMEM
    if "v7" in kind or "7x" in kind:
        return 4 << 20   # v7x: 3.2 TB/s per TC needs big steps to amortize overhead
    return 2 << 20       # v6e / default


def _num_tensorcores(kind):
    # Only v7x-class chips (2 TensorCores) benefit from an explicit core split.
    if "v7" in kind or "7x" in kind:
        return 2
    return 1


def _make_dice_kernel(block_rows, chunk_rows, blocks_per_core, rows_valid,
                      num_full_blocks, grid_blocks):
    """Builds the per-block partial-sum kernel with static tiling params."""
    nchunks = block_rows // chunk_rows
    shape3 = (chunk_rows // _SUBLANES, _SUBLANES, _LANES)
    need_mask = num_full_blocks < grid_blocks    # static: any partial/overflow block?
    all_masked = num_full_blocks == 0            # static: every block is partial

    def kernel(p_ref, t_ref, inter_ref, sp_ref, st_ref):
        c = pl.program_id(0)
        i = pl.program_id(1)

        @pl.when(i == 0)
        def _init():
            inter_ref[...] = jnp.zeros_like(inter_ref)
            sp_ref[...] = jnp.zeros_like(sp_ref)
            st_ref[...] = jnp.zeros_like(st_ref)

        g = c * blocks_per_core + i   # global block index

        def chunk_update(r0, carry, masked):
            inter, sp, st = carry
            r0a = r0 if isinstance(r0, int) else pl.multiple_of(r0, chunk_rows)
            x = p_ref[pl.ds(r0a, chunk_rows), :].astype(jnp.float32)
            t = t_ref[pl.ds(r0a, chunk_rows), :].astype(jnp.float32)
            # Single-transcendental sigmoid: one EUP push; mul/add ride the VPU.
            p = 0.5 * (jnp.tanh(0.5 * x) + 1.0)
            if masked:
                # Zero rows that fall past the end of the (rows, 128) array
                # (partial last block / overflow block re-reading valid data).
                valid = rows_valid - g * block_rows - r0
                row_id = lax.broadcasted_iota(jnp.int32, (chunk_rows, _LANES), 0)
                keep = row_id < valid
                p = jnp.where(keep, p, 0.0)
                t = jnp.where(keep, t, 0.0)
            # Tile-aligned split: sum over leading dim is a tree of VPU adds,
            # no cross-lane (XLU) reduction, accumulators stay (8,128) vregs.
            inter = inter + (p * t).reshape(shape3).sum(axis=0)
            sp = sp + p.reshape(shape3).sum(axis=0)
            st = st + t.reshape(shape3).sum(axis=0)
            return inter, sp, st

        def run(masked):
            zero = jnp.zeros((_SUBLANES, _LANES), jnp.float32)
            init = (zero, zero, zero)
            if nchunks == 1:
                out = chunk_update(0, init, masked)
            else:
                def body(k, carry):
                    return chunk_update(k * chunk_rows, carry, masked)
                out = lax.fori_loop(0, nchunks, body, init)
            inter_ref[...] += out[0]
            sp_ref[...] += out[1]
            st_ref[...] += out[2]

        if not need_mask:
            run(False)
        elif all_masked:
            run(True)
        else:
            @pl.when(g < num_full_blocks)
            def _full_blocks():
                run(False)

            @pl.when(g >= num_full_blocks)
            def _masked_blocks():
                run(True)

    return kernel


def dice_loss_pallas(pred, target, smooth=1.0):
    """DiceLoss.forward(pred, target) with the hot reduction in Pallas."""
    assert pred.shape == target.shape
    n = pred.size
    if n == 0:
        return jnp.float32(0.0)

    kind = _device_kind()
    itemsize_max = max(pred.dtype.itemsize, target.dtype.itemsize)
    itemsize_min = min(pred.dtype.itemsize, target.dtype.itemsize)
    # Packed-sublane multiple: 8 (32-bit), 16 (16-bit), 32 (8-bit) rows.
    sub = _SUBLANES * max(1, 4 // max(1, itemsize_min))

    # ---- present inputs as (rows, 128); zero-copy when n % 128 == 0 --------
    pf = pred.reshape(-1)
    tf = target.reshape(-1)
    lane_pad = (-n) % _LANES
    if lane_pad:
        # TODO(synk): lane-alignment pad copies the inputs once; only triggers
        # when pred.size % 128 != 0 (avoidable with a 1-D BlockSpec / jnp tail
        # reduction if this path ever becomes hot).
        pf = jnp.pad(pf, (0, lane_pad), constant_values=_PRED_PAD)  # sigmoid -> 0
        tf = jnp.pad(tf, (0, lane_pad), constant_values=0)
    rows = (n + lane_pad) // _LANES
    pf = pf.reshape(rows, _LANES)
    tf = tf.reshape(rows, _LANES)

    # ---- static tiling ------------------------------------------------------
    target_rows = max(sub, _target_block_bytes(kind) // (_LANES * itemsize_max))
    if target_rows >= _CHUNK_ROWS:
        target_rows = (target_rows // _CHUNK_ROWS) * _CHUNK_ROWS
    else:
        target_rows = max(sub, (target_rows // sub) * sub)
    block_rows = min(target_rows, _round_up(rows, sub))
    if block_rows >= _CHUNK_ROWS:
        block_rows = (block_rows // _CHUNK_ROWS) * _CHUNK_ROWS
        chunk_rows = _CHUNK_ROWS
    else:
        chunk_rows = block_rows

    num_blocks = _cdiv(rows, block_rows)
    ncores = _num_tensorcores(kind) if num_blocks >= 2 else 1
    grid_blocks = _round_up(num_blocks, ncores)     # masked overflow, never a pad copy
    blocks_per_core = grid_blocks // ncores
    num_full_blocks = rows // block_rows            # blocks with every row valid
    rows_valid = rows

    if grid_blocks == num_blocks:
        def in_index(c, i):
            return (c * blocks_per_core + i, 0)
    else:
        last_block = num_blocks - 1

        def in_index(c, i):
            return (jnp.minimum(c * blocks_per_core + i, last_block), 0)

    in_spec = pl.BlockSpec((block_rows, _LANES), in_index)
    acc_shape = jax.ShapeDtypeStruct((ncores, _SUBLANES, _LANES), jnp.float32)
    out_spec = pl.BlockSpec((None, _SUBLANES, _LANES), lambda c, i: (c, 0, 0))

    if ncores > 1:
        dims = (pltpu.CORE_PARALLEL, pltpu.ARBITRARY)
    else:
        dims = ("arbitrary", "arbitrary")

    kernel = _make_dice_kernel(block_rows, chunk_rows, blocks_per_core,
                               rows_valid, num_full_blocks, grid_blocks)

    inter_p, sum_p, sum_t = pl.pallas_call(
        kernel,
        out_shape=(acc_shape, acc_shape, acc_shape),
        grid_spec=pltpu.PrefetchScalarGridSpec(
            num_scalar_prefetch=0,
            grid=(ncores, blocks_per_core),
            in_specs=[in_spec, in_spec],
            out_specs=(out_spec, out_spec, out_spec)),
        compiler_params=pltpu.CompilerParams(
            dimension_semantics=dims,
            vmem_limit_bytes=48 * 1024 * 1024),
    )(pf, tf)

    # Final (tiny) cross-lane / cross-core reduction + dice ratio in XLA.
    intersection = jnp.sum(inter_p)
    union = jnp.sum(sum_p) + jnp.sum(sum_t)
    dice = (2.0 * intersection + smooth) / (union + smooth)
    return 1.0 - dice


def dice_loss_ref(pred, target, smooth=1.0):
    p = jax.nn.sigmoid(pred.astype(jnp.float32))
    t = target.astype(jnp.float32)
    inter = jnp.sum(p * t)
    union = jnp.sum(p) + jnp.sum(t)
    return 1.0 - (2.0 * inter + smooth) / (union + smooth)


if __name__ == "__main__":
    key = jax.random.PRNGKey(0)
    kp, kt = jax.random.split(key)
    # Small shapes consistent with a segmentation logit map: (B, C, H, W).
    pred = jax.random.normal(kp, (2, 4, 16, 16), dtype=jnp.float32)
    target = (jax.random.uniform(kt, (2, 4, 16, 16)) > 0.5).astype(jnp.float32)

    loss = dice_loss_pallas(pred, target, smooth=1.0)
    loss = jax.block_until_ready(loss)

    ref = dice_loss_ref(pred, target, smooth=1.0)
    assert jnp.allclose(loss, ref, rtol=1e-5, atol=1e-5), (loss, ref)
    print("KERNEL_OK")
</pallas_src>

<mosaic_0001>
module attributes {stable_mosaic.version = 11 : i64} {
  func.func @kernel(%arg0: i32, %arg1: i32, %arg2: memref<16x128xf32, #tpu.memory_space<vmem>>, %arg3: memref<16x128xf32, #tpu.memory_space<vmem>>, %arg4: memref<1x8x128xf32, #tpu.memory_space<vmem>>, %arg5: memref<1x8x128xf32, #tpu.memory_space<vmem>>, %arg6: memref<1x8x128xf32, #tpu.memory_space<vmem>>) attributes {dimension_semantics = [#tpu.dimension_semantics<arbitrary>, #tpu.dimension_semantics<arbitrary>], iteration_bounds = array<i64: 1, 1>, scalar_prefetch = 0 : i64, scratch_operands = 0 : i64, tpu.core_type = #tpu.core_type<tc>, window_params = [{transform_indices = @transform_0, window_bounds = array<i64: 16, 128>}, {transform_indices = @transform_1, window_bounds = array<i64: 16, 128>}, {transform_indices = @transform_2, window_bounds = array<i64: 1, 8, 128>}, {transform_indices = @transform_3, window_bounds = array<i64: 1, 8, 128>}, {transform_indices = @transform_4, window_bounds = array<i64: 1, 8, 128>}]} {
    %c0_i32 = arith.constant 0 : i32
    %0 = arith.cmpi eq, %arg1, %c0_i32 : i32
    %1 = arith.extui %0 : i1 to i32
    %c0_i32_0 = arith.constant 0 : i32
    %2 = arith.cmpi ne, %1, %c0_i32_0 : i32
    scf.if %2 {
      %cst_28 = arith.constant 0.000000e+00 : f32
      %41 = vector.broadcast %cst_28 : f32 to vector<8x128xf32>
      %c0_29 = arith.constant 0 : index
      %c0_30 = arith.constant 0 : index
      %c0_31 = arith.constant 0 : index
      %42 = vector.load %arg4[%c0_29, %c0_30, %c0_31] : memref<1x8x128xf32, #tpu.memory_space<vmem>>, vector<1x8x128xf32>
      %43 = vector.shape_cast %42 : vector<1x8x128xf32> to vector<8x128xf32>
      %44 = vector.shape_cast %41 : vector<8x128xf32> to vector<1x8x128xf32>
      tpu.vector_store %arg4[%c0_29, %c0_30, %c0_31], %44 {strides = array<i32>} : memref<1x8x128xf32, #tpu.memory_space<vmem>>, vector<1x8x128xf32>,
      %cst_32 = arith.constant 0.000000e+00 : f32
      %45 = vector.broadcast %cst_32 : f32 to vector<8x128xf32>
      %c0_33 = arith.constant 0 : index
      %c0_34 = arith.constant 0 : index
      %c0_35 = arith.constant 0 : index
      %46 = vector.load %arg5[%c0_33, %c0_34, %c0_35] : memref<1x8x128xf32, #tpu.memory_space<vmem>>, vector<1x8x128xf32>
      %47 = vector.shape_cast %46 : vector<1x8x128xf32> to vector<8x128xf32>
      %48 = vector.shape_cast %45 : vector<8x128xf32> to vector<1x8x128xf32>
      tpu.vector_store %arg5[%c0_33, %c0_34, %c0_35], %48 {strides = array<i32>} : memref<1x8x128xf32, #tpu.memory_space<vmem>>, vector<1x8x128xf32>,
      %cst_36 = arith.constant 0.000000e+00 : f32
      %49 = vector.broadcast %cst_36 : f32 to vector<8x128xf32>
      %c0_37 = arith.constant 0 : index
      %c0_38 = arith.constant 0 : index
      %c0_39 = arith.constant 0 : index
      %50 = vector.load %arg6[%c0_37, %c0_38, %c0_39] : memref<1x8x128xf32, #tpu.memory_space<vmem>>, vector<1x8x128xf32>
      %51 = vector.shape_cast %50 : vector<1x8x128xf32> to vector<8x128xf32>
      %52 = vector.shape_cast %49 : vector<8x128xf32> to vector<1x8x128xf32>
      tpu.vector_store %arg6[%c0_37, %c0_38, %c0_39], %52 {strides = array<i32>} : memref<1x8x128xf32, #tpu.memory_space<vmem>>, vector<1x8x128xf32>,
    } else {
    }
    %cst = arith.constant 0.000000e+00 : f32
    %3 = vector.broadcast %cst : f32 to vector<8x128xf32>
    %c0 = arith.constant 0 : index
    %c0_1 = arith.constant 0 : index
    %4 = vector.load %arg2[%c0, %c0_1] : memref<16x128xf32, #tpu.memory_space<vmem>>, vector<16x128xf32>
    %c0_2 = arith.constant 0 : index
    %c0_3 = arith.constant 0 : index
    %5 = vector.load %arg3[%c0_2, %c0_3] : memref<16x128xf32, #tpu.memory_space<vmem>>, vector<16x128xf32>
    %cst_4 = arith.constant 5.000000e-01 : f32
    %6 = vector.broadcast %cst_4 : f32 to vector<16x128xf32>
    %7 = arith.mulf %6, %4 : vector<16x128xf32>
    %8 = math.tanh %7 : vector<16x128xf32>
    %cst_5 = arith.constant 1.000000e+00 : f32
    %9 = vector.broadcast %cst_5 : f32 to vector<16x128xf32>
    %10 = arith.addf %8, %9 : vector<16x128xf32>
    %cst_6 = arith.constant 5.000000e-01 : f32
    %11 = vector.broadcast %cst_6 : f32 to vector<16x128xf32>
    %12 = arith.mulf %11, %10 : vector<16x128xf32>
    %13 = arith.mulf %12, %5 : vector<16x128xf32>
    %14 = vector.shape_cast %13 : vector<16x128xf32> to vector<2x8x128xf32>
    %cst_7 = arith.constant dense<0.000000e+00> : vector<8x128xf32>
    %15 = vector.multi_reduction <add>, %14, %cst_7 [0] : vector<2x8x128xf32> to vector<8x128xf32>
    %16 = arith.addf %3, %15 : vector<8x128xf32>
    %17 = vector.shape_cast %12 : vector<16x128xf32> to vector<2x8x128xf32>
    %cst_8 = arith.constant dense<0.000000e+00> : vector<8x128xf32>
    %18 = vector.multi_reduction <add>, %17, %cst_8 [0] : vector<2x8x128xf32> to vector<8x128xf32>
    %19 = arith.addf %3, %18 : vector<8x128xf32>
    %20 = vector.shape_cast %5 : vector<16x128xf32> to vector<2x8x128xf32>
    %cst_9 = arith.constant dense<0.000000e+00> : vector<8x128xf32>
    %21 = vector.multi_reduction <add>, %20, %cst_9 [0] : vector<2x8x128xf32> to vector<8x128xf32>
    %22 = arith.addf %3, %21 : vector<8x128xf32>
    %c0_10 = arith.constant 0 : index
    %c0_11 = arith.constant 0 : index
    %c0_12 = arith.constant 0 : index
    %23 = vector.load %arg4[%c0_10, %c0_11, %c0_12] : memref<1x8x128xf32, #tpu.memory_space<vmem>>, vector<1x8x128xf32>
    %24 = vector.shape_cast %23 : vector<1x8x128xf32> to vector<8x128xf32>
    %25 = arith.addf %24, %16 : vector<8x128xf32>
    %c0_13 = arith.constant 0 : index
    %c0_14 = arith.constant 0 : index
    %c0_15 = arith.constant 0 : index
    %26 = vector.load %arg4[%c0_13, %c0_14, %c0_15] : memref<1x8x128xf32, #tpu.memory_space<vmem>>, vector<1x8x128xf32>
    %27 = vector.shape_cast %26 : vector<1x8x128xf32> to vector<8x128xf32>
    %28 = vector.shape_cast %25 : vector<8x128xf32> to vector<1x8x128xf32>
    tpu.vector_store %arg4[%c0_13, %c0_14, %c0_15], %28 {strides = array<i32>} : memref<1x8x128xf32, #tpu.memory_space<vmem>>, vector<1x8x128xf32>,
    %c0_16 = arith.constant 0 : index
    %c0_17 = arith.constant 0 : index
    %c0_18 = arith.constant 0 : index
    %29 = vector.load %arg5[%c0_16, %c0_17, %c0_18] : memref<1x8x128xf32, #tpu.memory_space<vmem>>, vector<1x8x128xf32>
    %30 = vector.shape_cast %29 : vector<1x8x128xf32> to vector<8x128xf32>
    %31 = arith.addf %30, %19 : vector<8x128xf32>
    %c0_19 = arith.constant 0 : index
    %c0_20 = arith.constant 0 : index
    %c0_21 = arith.constant 0 : index
    %32 = vector.load %arg5[%c0_19, %c0_20, %c0_21] : memref<1x8x128xf32, #tpu.memory_space<vmem>>, vector<1x8x128xf32>
    %33 = vector.shape_cast %32 : vector<1x8x128xf32> to vector<8x128xf32>
    %34 = vector.shape_cast %31 : vector<8x128xf32> to vector<1x8x128xf32>
    tpu.vector_store %arg5[%c0_19, %c0_20, %c0_21], %34 {strides = array<i32>} : memref<1x8x128xf32, #tpu.memory_space<vmem>>, vector<1x8x128xf32>,
    %c0_22 = arith.constant 0 : index
    %c0_23 = arith.constant 0 : index
    %c0_24 = arith.constant 0 : index
    %35 = vector.load %arg6[%c0_22, %c0_23, %c0_24] : memref<1x8x128xf32, #tpu.memory_space<vmem>>, vector<1x8x128xf32>
    %36 = vector.shape_cast %35 : vector<1x8x128xf32> to vector<8x128xf32>
    %37 = arith.addf %36, %22 : vector<8x128xf32>
    %c0_25 = arith.constant 0 : index
    %c0_26 = arith.constant 0 : index
    %c0_27 = arith.constant 0 : index
    %38 = vector.load %arg6[%c0_25, %c0_26, %c0_27] : memref<1x8x128xf32, #tpu.memory_space<vmem>>, vector<1x8x128xf32>
    %39 = vector.shape_cast %38 : vector<1x8x128xf32> to vector<8x128xf32>
    %40 = vector.shape_cast %37 : vector<8x128xf32> to vector<1x8x128xf32>
    tpu.vector_store %arg6[%c0_25, %c0_26, %c0_27], %40 {strides = array<i32>} : memref<1x8x128xf32, #tpu.memory_space<vmem>>, vector<1x8x128xf32>,
    return
  }
  func.func @transform_0(%arg0: i32, %arg1: i32) -> (i32, i32) {
    %c1_i32 = arith.constant 1 : i32
    %0 = arith.muli %arg0, %c1_i32 : i32
    %1 = arith.addi %0, %arg1 : i32
    %c0_i32 = arith.constant 0 : i32
    %c0_i32_0 = arith.constant 0 : i32
    return %1, %c0_i32 : i32, i32
  }
  func.func @transform_1(%arg0: i32, %arg1: i32) -> (i32, i32) {
    %c1_i32 = arith.constant 1 : i32
    %0 = arith.muli %arg0, %c1_i32 : i32
    %1 = arith.addi %0, %arg1 : i32
    %c0_i32 = arith.constant 0 : i32
    %c0_i32_0 = arith.constant 0 : i32
    return %1, %c0_i32 : i32, i32
  }
  func.func @transform_2(%arg0: i32, %arg1: i32) -> (i32, i32, i32) {
    %c0_i32 = arith.constant 0 : i32
    %c0_i32_0 = arith.constant 0 : i32
    %c0_i32_1 = arith.constant 0 : i32
    return %arg0, %c0_i32, %c0_i32_0 : i32, i32, i32
  }
  func.func @transform_3(%arg0: i32, %arg1: i32) -> (i32, i32, i32) {
    %c0_i32 = arith.constant 0 : i32
    %c0_i32_0 = arith.constant 0 : i32
    %c0_i32_1 = arith.constant 0 : i32
    return %arg0, %c0_i32, %c0_i32_0 : i32, i32, i32
  }
  func.func @transform_4(%arg0: i32, %arg1: i32) -> (i32, i32, i32) {
    %c0_i32 = arith.constant 0 : i32
    %c0_i32_0 = arith.constant 0 : i32
    %c0_i32_1 = arith.constant 0 : i32
    return %arg0, %c0_i32, %c0_i32_0 : i32, i32, i32
  }
}

</mosaic_0001>

<llo_original>
// kernel: tpu_custom_call.1
$region0: #{tpu_custom_call.1}
  #allocation0 [shape = 'u32[]', space=smem, size = 0x4, offset = 0x4, fixed_abs, tag = 'smem constant byte address 0x4 - core index']
  #allocation1 [shape = 'u32[144,128]{1,0:T(1,128)}', space=vmem, size = 0x12000, scoped, tag = 'internal scratch']
  %s0 = inlined_call_operand.hbm [shape: f32[16,128], index: 0, kind: input, shape index: {}]
  %s1 = inlined_call_operand.hbm [shape: f32[16,128], index: 1, kind: input, shape index: {}]
  %s2 = inlined_call_operand.hbm [shape: f32[1,8,128], index: 2, kind: output, shape index: {0}]
  %s3 = inlined_call_operand.hbm [shape: f32[1,8,128], index: 3, kind: output, shape index: {1}]
  %s4 = inlined_call_operand.hbm [shape: f32[1,8,128], index: 4, kind: output, shape index: {2}]
  %5 = xla_tuple %s2, %s3, %s4
  %s6 = sld [smem:[#allocation0]]
  $region46: #{tpu_custom_call.1} parent=0
    _
  %s8 = ssub.s32 1, %s6
  %s9 = scalar_select 0, %s8, %s6
  $region1: #{tpu_custom_call.1} parent=0
    #allocation2 [shape = 'u8[8192]{0}', space=vmem, size = 0x2000, scoped, tag = 'input window, operand 0, single buffered']
    #allocation3 [shape = 's32[1]{0}', space=sflag, size = 0x4, scoped, tag = 'scoped memory for tpu_custom_call.1']
    #allocation4 [shape = 's32[1]{0}', space=sflag, size = 0x4, scoped, tag = 'scoped memory for tpu_custom_call.1']
    #allocation5 [shape = 'u8[8192]{0}', space=vmem, size = 0x2000, scoped, tag = 'input window, operand 1, single buffered']
    #allocation6 [shape = 's32[1]{0}', space=sflag, size = 0x4, scoped, tag = 'scoped memory for tpu_custom_call.1']
    #allocation7 [shape = 'u8[4096]{0}', space=vmem, size = 0x1000, scoped, tag = 'output window, operand 0, single buffered']
    #allocation8 [shape = 'u8[4096]{0}', space=vmem, size = 0x1000, scoped, tag = 'output window, operand 1, single buffered']
    #allocation9 [shape = 's32[1]{0}', space=sflag, size = 0x4, scoped, tag = 'scoped memory for tpu_custom_call.1']
    #allocation10 [shape = 'u8[4096]{0}', space=vmem, size = 0x1000, scoped, tag = 'output window, operand 2, single buffered']
    %10 = vsyncpa [#allocation3], 0
    %11 = vsyncpa [#allocation6], 0
    %12 = vsyncpa [#allocation4], 0
    %13 = vsyncpa [#allocation9], 0
    // Predicated region
    $region2: #{tpu_custom_call.1} parent=1 // pred_check
      _
    $region3: #{tpu_custom_call.1} parent=1 // pred_check_branch
      %15 = sbr.rel (0) target = $region5
    $region4: #{tpu_custom_call.1} parent=1 // pred_region
      %s16 = sadd.s32 0, 0
      %s17 = smul.u32 2, %s16
      %s19 = ssub.s32 256, 256
      %20 = vsyncadd [#allocation3], %s19
      %s21 = smul.addr %s17, 128
      %s22 = scalar_lea.hbm %s0, %s21
      %s23 = sshll.u32 [#allocation2], 4
      %s24 = int_to_ptr.vmem [resolvable:$true] %s23
      %29 = dma.hbm_to_vmem [thread:$0]  %s22, 256, %s24, [#allocation3], 128, 128, 8
    $region5: #{tpu_custom_call.1} parent=1 // pred_fallthru
      _
    // Predicated region
    $region6: #{tpu_custom_call.1} parent=1 // pred_check
      _
    $region7: #{tpu_custom_call.1} parent=1 // pred_check_branch
      %31 = sbr.rel (0) target = $region9
    $region8: #{tpu_custom_call.1} parent=1 // pred_region
      %s32 = sadd.s32 0, 0
      %s33 = smul.u32 2, %s32
      %s35 = ssub.s32 256, 256
      %36 = vsyncadd [#allocation6], %s35
      %s37 = smul.addr %s33, 128
      %s38 = scalar_lea.hbm %s1, %s37
      %s39 = sshll.u32 [#allocation5], 4
      %s40 = int_to_ptr.vmem [resolvable:$true] %s39
      %45 = dma.hbm_to_vmem [thread:$0]  %s38, 256, %s40, [#allocation6], 128, 128, 8
    $region9: #{tpu_custom_call.1} parent=1 // pred_fallthru
      _
    // Predicated region
    $region10: #{tpu_custom_call.1} parent=1 // pred_check
      _
    $region11: #{tpu_custom_call.1} parent=1 // pred_check_branch
      %47 = sbr.rel (0) target = $region13
    $region12: #{tpu_custom_call.1} parent=1 // pred_region
      %48 = dma.done [#allocation3], 256
    $region13: #{tpu_custom_call.1} parent=1 // pred_fallthru
      _
    // Predicated region
    $region14: #{tpu_custom_call.1} parent=1 // pred_check
      _
    $region15: #{tpu_custom_call.1} parent=1 // pred_check_branch
      %50 = sbr.rel (0) target = $region17
    $region16: #{tpu_custom_call.1} parent=1 // pred_region
      %51 = dma.done [#allocation6], 256
    $region17: #{tpu_custom_call.1} parent=1 // pred_fallthru
      _
    %s52 = sadd.s32 0, 0
    %s53 = smul.u32 2, %s52
    %s54 = sadd.s32 0, 0
    %s55 = smul.u32 2, %s54
    %p56 = scmp.eq.s32.totalorder 0, 0
    // Predicated region
    $region18: #{tpu_custom_call.1} parent=1 // pred_check
      %p57 = pneg %p56
    $region19: #{tpu_custom_call.1} parent=1 // pred_check_branch
      %59 = sbr.rel (%p57) target = $region21
    $region20: #{tpu_custom_call.1} parent=1 // pred_region
      %60 = vst [vmem:[#allocation7] sm:$0xff] 0.0
      %61 = vst [vmem:[#allocation8] sm:$0xff] 0.0
      %62 = vst [vmem:[#allocation10] sm:$0xff] 0.0
    $region21: #{tpu_custom_call.1} parent=1 // pred_fallthru
      _
    %v63 = vld [vmem:[#allocation2] sm:$0xff]
    %v64 = vld [vmem:[#allocation2 + $0x8] sm:$0xff]
    %v65 = vld [vmem:[#allocation5] sm:$0xff]
    %v66 = vld [vmem:[#allocation5 + $0x8] sm:$0xff]
    %v67 = vmul.f32 %v63, 0.5
    %v68 = vmul.f32 %v64, 0.5
    %v69 = vtanh.pop %v67
    %v70 = vtanh.pop %v68
    %v71 = vadd.f32 %v69, 1.0
    %v72 = vadd.f32 %v70, 1.0
    %v73 = vmul.f32 %v71, 0.5
    %v74 = vmul.f32 %v72, 0.5
    %v75 = vmul.f32 %v73, %v65
    %v76 = vmul.f32 %v74, %v66
    %v77 = vadd.f32 %v75, %v76
    %v78 = vadd.f32 %v77, 0.0
    %v79 = vadd.f32 %v73, %v74
    %v80 = vadd.f32 %v79, 0.0
    %v81 = vadd.f32 %v65, %v66
    %v82 = vadd.f32 %v81, 0.0
    %v83 = vld [vmem:[#allocation7] sm:$0xff]
    %v84 = vadd.f32 %v83, %v78
    %85 = vst [vmem:[#allocation7] sm:$0xff] %v84
    %v86 = vld [vmem:[#allocation8] sm:$0xff]
    %v87 = vadd.f32 %v86, %v80
    %88 = vst [vmem:[#allocation8] sm:$0xff] %v87
    %v89 = vld [vmem:[#allocation10] sm:$0xff]
    %v90 = vadd.f32 %v89, %v82
    %91 = vst [vmem:[#allocation10] sm:$0xff] %v90
    // Predicated region
    $region22: #{tpu_custom_call.1} parent=1 // pred_check
      _
    $region23: #{tpu_custom_call.1} parent=1 // pred_check_branch
      %93 = sbr.rel (0) target = $region25
    $region24: #{tpu_custom_call.1} parent=1 // pred_region
      %s95 = ssub.s32 128, 128
      %96 = vsyncadd [#allocation4], %s95
      %s98 = sshll.u32 [#allocation7], 4
      %s99 = int_to_ptr.vmem [resolvable:$true] %s98
      %101 = dma.vmem_to_hbm [thread:$0]  %s99, 128, %s2, [#allocation4]
    $region25: #{tpu_custom_call.1} parent=1 // pred_fallthru
      _
    // Predicated region
    $region26: #{tpu_custom_call.1} parent=1 // pred_check
      _
    $region27: #{tpu_custom_call.1} parent=1 // pred_check_branch
      %103 = sbr.rel (0) target = $region29
    $region28: #{tpu_custom_call.1} parent=1 // pred_region
      %s105 = ssub.s32 128, 128
      %106 = vsyncadd [#allocation9], %s105
      %s108 = sshll.u32 [#allocation8], 4
      %s109 = int_to_ptr.vmem [resolvable:$true] %s108
      %111 = dma.vmem_to_hbm [thread:$0]  %s109, 128, %s3, [#allocation9]
    $region29: #{tpu_custom_call.1} parent=1 // pred_fallthru
      _
    // Predicated region
    $region30: #{tpu_custom_call.1} parent=1 // pred_check
      _
    $region31: #{tpu_custom_call.1} parent=1 // pred_check_branch
      %113 = sbr.rel (0) target = $region33
    $region32: #{tpu_custom_call.1} parent=1 // pred_region
      %s115 = ssub.s32 128, 128
      %116 = vsyncadd [#allocation9], %s115
      %s118 = sshll.u32 [#allocation10], 4
      %s119 = int_to_ptr.vmem [resolvable:$true] %s118
      %121 = dma.vmem_to_hbm [thread:$0]  %s119, 128, %s4, [#allocation9]
    $region33: #{tpu_custom_call.1} parent=1 // pred_fallthru
      _
    // Predicated region
    $region34: #{tpu_custom_call.1} parent=1 // pred_check
      _
    $region35: #{tpu_custom_call.1} parent=1 // pred_check_branch
      %123 = sbr.rel (0) target = $region37
    $region36: #{tpu_custom_call.1} parent=1 // pred_region
      %124 = dma.done [#allocation4], 128
    $region37: #{tpu_custom_call.1} parent=1 // pred_fallthru
      _
    // Predicated region
    $region38: #{tpu_custom_call.1} parent=1 // pred_check
      _
    $region39: #{tpu_custom_call.1} parent=1 // pred_check_branch
      %126 = sbr.rel (0) target = $region41
    $region40: #{tpu_custom_call.1} parent=1 // pred_region
      %127 = dma.done [#allocation9], 128
    $region41: #{tpu_custom_call.1} parent=1 // pred_fallthru
      _
    // Predicated region
    $region42: #{tpu_custom_call.1} parent=1 // pred_check
      _
    $region43: #{tpu_custom_call.1} parent=1 // pred_check_branch
      %129 = sbr.rel (0) target = $region45
    $region44: #{tpu_custom_call.1} parent=1 // pred_region
      %130 = dma.done [#allocation9], 128
    $region45: #{tpu_custom_call.1} parent=1 // pred_fallthru
      _
    %131 = vsyncpa [#allocation3], 1
    %132 = vsyncpa [#allocation6], 1
    %133 = vsyncpa [#allocation4], 1
    %134 = vsyncpa [#allocation9], 1

</llo_original>
